<compile_context>
chip_gen: v7x
topology: tpu7x:2x2x1
jax: 0.10.0
libtpu: 0.0.40
codegen_flags: <defaults>
</compile_context>

<pallas_src>
import functools

import jax
import jax.numpy as jnp
from jax.experimental import pallas as pl
from jax.experimental.pallas import tpu as pltpu

MEMORY_WEIGHT = 0.5
CONSISTENCY_WEIGHT = 0.3
_EPS = 1e-8

# Per-input tile budget (bytes). 2 inputs x 2 pipeline buffers x 2 MiB + scratch
# stays well under the smallest scoped-VMEM default (16 MiB on v5e) and far
# under v7x's 64 MiB physical VMEM, while being big enough (>=512 rows of f32)
# to sit near the HBM roofline on v6e.
_TILE_BYTES_CAP = 2 << 20


def _anomaly_loss_kernel(x_ref, recon_ref, mem_ref, out_ref,
                         acc_recon_ref, acc_temp_ref, *,
                         inv_recon, inv_temp, inv_mem,
                         memory_weight, consistency_weight):
    b = pl.program_id(0)

    # ---- init accumulators on the first grid step --------------------------
    @pl.when(b == 0)
    def _():
        acc_recon_ref[...] = jnp.zeros_like(acc_recon_ref)
        acc_temp_ref[...] = jnp.zeros_like(acc_temp_ref)

    x = x_ref[...].astype(jnp.float32)
    r = recon_ref[...].astype(jnp.float32)

    # Identity: (x[t+1]-x[t]) - (r[t+1]-r[t]) == d[t+1] - d[t] with d = x - r,
    # so d is computed once and reused for both MSE terms.
    d = x - r
    acc_recon_ref[...] += jnp.sum(d * d)

    # Temporal-consistency term: first-order diff of d along the time axis
    # (axis 1 is whole inside every block, so no halo / boundary terms lost).
    td = d[:, 1:, :] - d[:, :-1, :]
    acc_temp_ref[...] += jnp.sum(td * td)

    # ---- finalize on the last grid step ------------------------------------
    @pl.when(b == pl.num_programs(0) - 1)
    def _():
        # Tiny resident memory-score block: -log only here, not in the hot loop.
        m = mem_ref[...].astype(jnp.float32)
        mem_sum = jnp.sum(-jnp.log(m + _EPS))
        total = (acc_recon_ref[...] * inv_recon
                 + memory_weight * mem_sum * inv_mem
                 + consistency_weight * acc_temp_ref[...] * inv_temp)
        out_ref[...] = total.astype(jnp.float32)


def _largest_divisor_at_most(n, cap):
    cap = max(1, min(n, cap))
    for d in range(cap, 0, -1):
        if n % d == 0:
            return d
    return 1


def anomaly_loss(x, recon, memory_scores,
                 memory_weight=MEMORY_WEIGHT,
                 consistency_weight=CONSISTENCY_WEIGHT,
                 tile_bytes_cap=_TILE_BYTES_CAP):
    """Pallas TPU implementation of AnomalyLoss.forward.

    x, recon: (B, T, D); memory_scores: (B, K) array or list of (B,) arrays.
    Returns a scalar float32.
    """
    # glue: mirror torch.stack(memory_scores, dim=1) for the list case
    if isinstance(memory_scores, (list, tuple)):
        mem = jnp.stack(memory_scores, axis=1)
    else:
        mem = jnp.asarray(memory_scores)
    mem_flat = mem.reshape(1, -1)  # tiny; flattened so the side input is 2-D

    B, T, D = x.shape
    if T < 2:
        # PyTorch would produce NaN (mean over an empty diff); fail loudly here.
        raise ValueError("AnomalyLoss requires T >= 2 for the temporal term.")

    # Tile over batch only (full (T, D) per block => no halo for the time diff).
    bytes_per_batch = T * D * 4  # f32 working copy in VMEM
    b_tile = _largest_divisor_at_most(B, max(1, tile_bytes_cap // max(1, bytes_per_batch)))
    grid = (B // b_tile,)

    block_bytes = b_tile * T * D * 4
    # 2 big inputs x 2 pipeline buffers + resident mem block + scratch + slack.
    vmem_limit = int(min(max(4 * block_bytes + mem_flat.size * 4 + (2 << 20),
                             16 << 20),
                         32 << 20))

    # Fold the (distinct!) denominators once at finalize time.
    inv_recon = 1.0 / float(B * T * D)
    inv_temp = 1.0 / float(B * (T - 1) * D)
    inv_mem = 1.0 / float(mem_flat.size)

    kernel = functools.partial(
        _anomaly_loss_kernel,
        inv_recon=inv_recon, inv_temp=inv_temp, inv_mem=inv_mem,
        memory_weight=float(memory_weight),
        consistency_weight=float(consistency_weight))

    # NOTE: on v7x a per-block partial-sum output with a "parallel" batch axis
    # would additionally use both TensorCores; the sequential accumulator here
    # is the simplest correct form for all generations.
    out = pl.pallas_call(
        kernel,
        out_shape=jax.ShapeDtypeStruct((1, 1), jnp.float32),
        grid_spec=pltpu.PrefetchScalarGridSpec(
            num_scalar_prefetch=0,
            grid=grid,
            in_specs=[
                pl.BlockSpec((b_tile, T, D), lambda b: (b, 0, 0)),
                pl.BlockSpec((b_tile, T, D), lambda b: (b, 0, 0)),
                # small untiled side input, resident across the whole grid
                pl.BlockSpec(mem_flat.shape, lambda b: (0, 0)),
            ],
            out_specs=pl.BlockSpec((1, 1), lambda b: (0, 0)),
            scratch_shapes=[
                pltpu.VMEM((1, 1), jnp.float32),  # running sum(d*d)
                pltpu.VMEM((1, 1), jnp.float32),  # running sum((Δt d)^2)
            ],
        ),
        compiler_params=pltpu.CompilerParams(
            dimension_semantics=("arbitrary",),   # accumulation axis
            vmem_limit_bytes=vmem_limit,
        ),
    )(x, recon, mem_flat)
    return out[0, 0]


def _reference(x, recon, mem,
               memory_weight=MEMORY_WEIGHT,
               consistency_weight=CONSISTENCY_WEIGHT):
    x = x.astype(jnp.float32)
    recon = recon.astype(jnp.float32)
    recon_loss = jnp.mean((x - recon) ** 2)
    mem_loss = jnp.mean(-jnp.log(mem.astype(jnp.float32) + 1e-8))
    dx = x[:, 1:] - x[:, :-1]
    dr = recon[:, 1:] - recon[:, :-1]
    temp_loss = jnp.mean((dx - dr) ** 2)
    return recon_loss + memory_weight * mem_loss + consistency_weight * temp_loss


if __name__ == "__main__":
    key = jax.random.PRNGKey(0)
    k1, k2, k3, k4, k5, k6 = jax.random.split(key, 6)

    # ---- case 1: module-sized shapes (single grid step) --------------------
    B, T, D, K = 2, 8, 32, 4
    x = jax.random.normal(k1, (B, T, D), dtype=jnp.float32)
    recon = jax.random.normal(k2, (B, T, D), dtype=jnp.float32)
    # memory scores in (0, 1) so the log is well-defined (attention-style)
    memory_scores = jax.random.uniform(k3, (B, K), dtype=jnp.float32,
                                       minval=0.01, maxval=1.0)

    loss = anomaly_loss(x, recon, memory_scores)
    jax.block_until_ready(loss)
    ref = _reference(x, recon, memory_scores)
    assert jnp.allclose(loss, ref, rtol=1e-5, atol=1e-5), (loss, ref)

    # ---- case 2: force a multi-step grid to exercise the accumulator path --
    B2, T2, D2, K2 = 8, 8, 128, 4
    x2 = jax.random.normal(k4, (B2, T2, D2), dtype=jnp.float32)
    recon2 = jax.random.normal(k5, (B2, T2, D2), dtype=jnp.float32)
    mem2 = jax.random.uniform(k6, (B2, K2), dtype=jnp.float32,
                              minval=0.01, maxval=1.0)
    # tiny tile cap -> b_tile=2, grid=(4,): init / accumulate / finalize all run
    loss2 = anomaly_loss(x2, recon2, mem2, tile_bytes_cap=2 * T2 * D2 * 4)
    jax.block_until_ready(loss2)
    ref2 = _reference(x2, recon2, mem2)
    assert jnp.allclose(loss2, ref2, rtol=1e-5, atol=1e-5), (loss2, ref2)

    print("KERNEL_OK")
</pallas_src>

<mosaic_0001>
module attributes {stable_mosaic.version = 11 : i64} {
  func.func @_anomaly_loss_kernel(%arg0: i32, %arg1: memref<2x8x32xf32, #tpu.memory_space<vmem>>, %arg2: memref<2x8x32xf32, #tpu.memory_space<vmem>>, %arg3: memref<1x8xf32, #tpu.memory_space<vmem>>, %arg4: memref<1x1xf32, #tpu.memory_space<vmem>>, %arg5: memref<1x1xf32, #tpu.memory_space<vmem>>, %arg6: memref<1x1xf32, #tpu.memory_space<vmem>>) attributes {dimension_semantics = [#tpu.dimension_semantics<arbitrary>], iteration_bounds = array<i64: 1>, scalar_prefetch = 0 : i64, scratch_operands = 2 : i64, tpu.core_type = #tpu.core_type<tc>, window_params = [{transform_indices = @transform_0, window_bounds = array<i64: 2, 8, 32>}, {transform_indices = @transform_1, window_bounds = array<i64: 2, 8, 32>}, {pipeline_mode = #tpu.pipeline_mode<synchronous>, transform_indices = @transform_2, window_bounds = array<i64: 1, 8>}, {pipeline_mode = #tpu.pipeline_mode<synchronous>, transform_indices = @transform_3, window_bounds = array<i64: 1, 1>}]} {
    %c0_i32 = arith.constant 0 : i32
    %0 = arith.cmpi eq, %arg0, %c0_i32 : i32
    %1 = arith.extui %0 : i1 to i32
    %c0_i32_0 = arith.constant 0 : i32
    %2 = arith.cmpi ne, %1, %c0_i32_0 : i32
    scf.if %2 {
      %cst_17 = arith.constant 0.000000e+00 : f32
      %30 = vector.broadcast %cst_17 : f32 to vector<1x1xf32>
      %c0_18 = arith.constant 0 : index
      %c0_19 = arith.constant 0 : index
      %31 = vector.load %arg5[%c0_18, %c0_19] : memref<1x1xf32, #tpu.memory_space<vmem>>, vector<1x1xf32>
      tpu.vector_store %arg5[%c0_18, %c0_19], %30 {strides = array<i32>} : memref<1x1xf32, #tpu.memory_space<vmem>>, vector<1x1xf32>,
      %cst_20 = arith.constant 0.000000e+00 : f32
      %32 = vector.broadcast %cst_20 : f32 to vector<1x1xf32>
      %c0_21 = arith.constant 0 : index
      %c0_22 = arith.constant 0 : index
      %33 = vector.load %arg6[%c0_21, %c0_22] : memref<1x1xf32, #tpu.memory_space<vmem>>, vector<1x1xf32>
      tpu.vector_store %arg6[%c0_21, %c0_22], %32 {strides = array<i32>} : memref<1x1xf32, #tpu.memory_space<vmem>>, vector<1x1xf32>,
    } else {
    }
    %c0 = arith.constant 0 : index
    %c0_1 = arith.constant 0 : index
    %c0_2 = arith.constant 0 : index
    %3 = vector.load %arg1[%c0, %c0_1, %c0_2] : memref<2x8x32xf32, #tpu.memory_space<vmem>>, vector<2x8x32xf32>
    %c0_3 = arith.constant 0 : index
    %c0_4 = arith.constant 0 : index
    %c0_5 = arith.constant 0 : index
    %4 = vector.load %arg2[%c0_3, %c0_4, %c0_5] : memref<2x8x32xf32, #tpu.memory_space<vmem>>, vector<2x8x32xf32>
    %5 = arith.subf %3, %4 : vector<2x8x32xf32>
    %c0_6 = arith.constant 0 : index
    %c0_7 = arith.constant 0 : index
    %6 = vector.load %arg5[%c0_6, %c0_7] : memref<1x1xf32, #tpu.memory_space<vmem>>, vector<1x1xf32>
    %7 = arith.mulf %5, %5 : vector<2x8x32xf32>
    %8 = vector.shape_cast %7 : vector<2x8x32xf32> to vector<1x2x8x32xf32>
    %cst = arith.constant dense<0.000000e+00> : vector<1xf32>
    %9 = vector.multi_reduction <add>, %8, %cst [1, 2, 3] : vector<1x2x8x32xf32> to vector<1xf32>
    %10 = vector.shape_cast %9 : vector<1xf32> to vector<1x1x1x1xf32>
    %11 = vector.extract %10[0, 0, 0, 0] : f32 from vector<1x1x1x1xf32>
    %12 = vector.broadcast %11 : f32 to vector<1x1xf32>
    %13 = arith.addf %6, %12 : vector<1x1xf32>
    %c0_8 = arith.constant 0 : index
    %c0_9 = arith.constant 0 : index
    %14 = vector.load %arg5[%c0_8, %c0_9] : memref<1x1xf32, #tpu.memory_space<vmem>>, vector<1x1xf32>
    tpu.vector_store %arg5[%c0_8, %c0_9], %13 {strides = array<i32>} : memref<1x1xf32, #tpu.memory_space<vmem>>, vector<1x1xf32>,
    %15 = vector.extract_strided_slice %5 {offsets = [0, 1, 0], sizes = [2, 7, 32], strides = [1, 1, 1]} : vector<2x8x32xf32> to vector<2x7x32xf32>
    %16 = vector.extract_strided_slice %5 {offsets = [0, 0, 0], sizes = [2, 7, 32], strides = [1, 1, 1]} : vector<2x8x32xf32> to vector<2x7x32xf32>
    %17 = arith.subf %15, %16 : vector<2x7x32xf32>
    %c0_10 = arith.constant 0 : index
    %c0_11 = arith.constant 0 : index
    %18 = vector.load %arg6[%c0_10, %c0_11] : memref<1x1xf32, #tpu.memory_space<vmem>>, vector<1x1xf32>
    %19 = arith.mulf %17, %17 : vector<2x7x32xf32>
    %20 = vector.shape_cast %19 : vector<2x7x32xf32> to vector<1x2x7x32xf32>
    %cst_12 = arith.constant dense<0.000000e+00> : vector<1xf32>
    %21 = vector.multi_reduction <add>, %20, %cst_12 [1, 2, 3] : vector<1x2x7x32xf32> to vector<1xf32>
    %22 = vector.shape_cast %21 : vector<1xf32> to vector<1x1x1x1xf32>
    %23 = vector.extract %22[0, 0, 0, 0] : f32 from vector<1x1x1x1xf32>
    %24 = vector.broadcast %23 : f32 to vector<1x1xf32>
    %25 = arith.addf %18, %24 : vector<1x1xf32>
    %c0_13 = arith.constant 0 : index
    %c0_14 = arith.constant 0 : index
    %26 = vector.load %arg6[%c0_13, %c0_14] : memref<1x1xf32, #tpu.memory_space<vmem>>, vector<1x1xf32>
    tpu.vector_store %arg6[%c0_13, %c0_14], %25 {strides = array<i32>} : memref<1x1xf32, #tpu.memory_space<vmem>>, vector<1x1xf32>,
    %c0_i32_15 = arith.constant 0 : i32
    %27 = arith.cmpi eq, %arg0, %c0_i32_15 : i32
    %28 = arith.extui %27 : i1 to i32
    %c0_i32_16 = arith.constant 0 : i32
    %29 = arith.cmpi ne, %28, %c0_i32_16 : i32
    scf.if %29 {
      %c0_17 = arith.constant 0 : index
      %c0_18 = arith.constant 0 : index
      %30 = vector.load %arg3[%c0_17, %c0_18] : memref<1x8xf32, #tpu.memory_space<vmem>>, vector<1x8xf32>
      %cst_19 = arith.constant 9.99999993E-9 : f32
      %31 = vector.broadcast %cst_19 : f32 to vector<1x8xf32>
      %32 = arith.addf %30, %31 : vector<1x8xf32>
      %33 = math.log %32 : vector<1x8xf32>
      %cst_20 = arith.constant 0.000000e+00 : f32
      %34 = vector.broadcast %cst_20 : f32 to vector<1x8xf32>
      %35 = arith.subf %34, %33 : vector<1x8xf32>
      %36 = vector.shape_cast %35 : vector<1x8xf32> to vector<1x1x8xf32>
      %cst_21 = arith.constant dense<0.000000e+00> : vector<1xf32>
      %37 = vector.multi_reduction <add>, %36, %cst_21 [1, 2] : vector<1x1x8xf32> to vector<1xf32>
      %38 = vector.shape_cast %37 : vector<1xf32> to vector<1x1x1xf32>
      %39 = vector.extract %38[0, 0, 0] : f32 from vector<1x1x1xf32>
      %c0_22 = arith.constant 0 : index
      %c0_23 = arith.constant 0 : index
      %40 = vector.load %arg5[%c0_22, %c0_23] : memref<1x1xf32, #tpu.memory_space<vmem>>, vector<1x1xf32>
      %cst_24 = arith.constant 0.001953125 : f32
      %41 = vector.broadcast %cst_24 : f32 to vector<1x1xf32>
      %42 = arith.mulf %40, %41 : vector<1x1xf32>
      %cst_25 = arith.constant 5.000000e-01 : f32
      %43 = arith.mulf %cst_25, %39 : f32
      %cst_26 = arith.constant 1.250000e-01 : f32
      %44 = arith.mulf %43, %cst_26 : f32
      %45 = vector.broadcast %44 : f32 to vector<1x1xf32>
      %46 = arith.addf %42, %45 : vector<1x1xf32>
      %c0_27 = arith.constant 0 : index
      %c0_28 = arith.constant 0 : index
      %47 = vector.load %arg6[%c0_27, %c0_28] : memref<1x1xf32, #tpu.memory_space<vmem>>, vector<1x1xf32>
      %cst_29 = arith.constant 3.000000e-01 : f32
      %48 = vector.broadcast %cst_29 : f32 to vector<1x1xf32>
      %49 = arith.mulf %48, %47 : vector<1x1xf32>
      %cst_30 = arith.constant 0.00223214296 : f32
      %50 = vector.broadcast %cst_30 : f32 to vector<1x1xf32>
      %51 = arith.mulf %49, %50 : vector<1x1xf32>
      %52 = arith.addf %46, %51 : vector<1x1xf32>
      %c0_31 = arith.constant 0 : index
      %c0_32 = arith.constant 0 : index
      %53 = vector.load %arg4[%c0_31, %c0_32] : memref<1x1xf32, #tpu.memory_space<vmem>>, vector<1x1xf32>
      tpu.vector_store %arg4[%c0_31, %c0_32], %52 {strides = array<i32>} : memref<1x1xf32, #tpu.memory_space<vmem>>, vector<1x1xf32>,
    } else {
    }
    return
  }
  func.func @transform_0(%arg0: i32) -> (i32, i32, i32) {
    %c0_i32 = arith.constant 0 : i32
    %c0_i32_0 = arith.constant 0 : i32
    %c0_i32_1 = arith.constant 0 : i32
    return %arg0, %c0_i32, %c0_i32_0 : i32, i32, i32
  }
  func.func @transform_1(%arg0: i32) -> (i32, i32, i32) {
    %c0_i32 = arith.constant 0 : i32
    %c0_i32_0 = arith.constant 0 : i32
    %c0_i32_1 = arith.constant 0 : i32
    return %arg0, %c0_i32, %c0_i32_0 : i32, i32, i32
  }
  func.func @transform_2(%arg0: i32) -> (i32, i32) {
    %c0_i32 = arith.constant 0 : i32
    %c0_i32_0 = arith.constant 0 : i32
    %c0_i32_1 = arith.constant 0 : i32
    return %c0_i32, %c0_i32_0 : i32, i32
  }
  func.func @transform_3(%arg0: i32) -> (i32, i32) {
    %c0_i32 = arith.constant 0 : i32
    %c0_i32_0 = arith.constant 0 : i32
    %c0_i32_1 = arith.constant 0 : i32
    return %c0_i32, %c0_i32_0 : i32, i32
  }
}

</mosaic_0001>

<llo_original>
// kernel: tpu_custom_call.1
$region0: #{tpu_custom_call.1}
  #allocation0 [shape = 'u32[]', space=smem, size = 0x4, offset = 0x4, fixed_abs, tag = 'smem constant byte address 0x4 - core index']
  #allocation1 [shape = 'u32[144,128]{1,0:T(1,128)}', space=vmem, size = 0x12000, scoped, tag = 'internal scratch']
  #allocation2 [shape = 'f32[1,1]{1,0:T(1,128)}', space=vmem, size = 0x200, scoped, tag = 'scratch operand']
  #allocation3 [shape = 'f32[1,1]{1,0:T(1,128)}', space=vmem, size = 0x200, scoped, tag = 'scratch operand']
  %s0 = inlined_call_operand.hbm [shape: f32[2,8,32], index: 0, kind: input, shape index: {}]
  %s1 = inlined_call_operand.hbm [shape: f32[2,8,32], index: 1, kind: input, shape index: {}]
  %s2 = inlined_call_operand.vmem [shape: f32[1,8], index: 2, kind: input, shape index: {}]
  %s3 = inlined_call_operand.hbm [shape: f32[1,1], index: 3, kind: output, shape index: {}]
  %s4 = sld [smem:[#allocation0]]
  $region38: #{tpu_custom_call.1} parent=0
    _
  %s6 = ssub.s32 1, %s4
  %s7 = scalar_select 0, %s6, %s4
  $region1: #{tpu_custom_call.1} parent=0
    #allocation4 [shape = 'u8[8192]{0}', space=vmem, size = 0x2000, scoped, tag = 'input window, operand 0, single buffered']
    #allocation5 [shape = 's32[1]{0}', space=sflag, size = 0x4, scoped, tag = 'scoped memory for tpu_custom_call.1']
    #allocation6 [shape = 's32[1]{0}', space=sflag, size = 0x4, scoped, tag = 'scoped memory for tpu_custom_call.1']
    #allocation7 [shape = 'u8[8192]{0}', space=vmem, size = 0x2000, scoped, tag = 'input window, operand 1, single buffered']
    #allocation8 [shape = 's32[1]{0}', space=sflag, size = 0x4, scoped, tag = 'scoped memory for tpu_custom_call.1']
    #allocation9 [shape = 'u8[512]{0}', space=vmem, size = 0x400, scoped, tag = 'output window, operand 0, single buffered']
    %8 = vsyncpa [#allocation5], 0
    %9 = vsyncpa [#allocation8], 0
    %10 = vsyncpa [#allocation6], 0
    // Predicated region
    $region2: #{tpu_custom_call.1} parent=1 // pred_check
      _
    $region3: #{tpu_custom_call.1} parent=1 // pred_check_branch
      %12 = sbr.rel (0) target = $region5
    $region4: #{tpu_custom_call.1} parent=1 // pred_region
      %s14 = ssub.s32 256, 256
      %15 = vsyncadd [#allocation5], %s14
      %s16 = sshll.u32 [#allocation4], 4
      %s17 = int_to_ptr.vmem [resolvable:$true] %s16
      %22 = dma.hbm_to_vmem [thread:$0]  %s0, 256, %s17, [#allocation5], 128, 128, 8
    $region5: #{tpu_custom_call.1} parent=1 // pred_fallthru
      _
    // Predicated region
    $region6: #{tpu_custom_call.1} parent=1 // pred_check
      _
    $region7: #{tpu_custom_call.1} parent=1 // pred_check_branch
      %24 = sbr.rel (0) target = $region9
    $region8: #{tpu_custom_call.1} parent=1 // pred_region
      %s26 = ssub.s32 256, 256
      %27 = vsyncadd [#allocation8], %s26
      %s28 = sshll.u32 [#allocation7], 4
      %s29 = int_to_ptr.vmem [resolvable:$true] %s28
      %34 = dma.hbm_to_vmem [thread:$0]  %s1, 256, %s29, [#allocation8], 128, 128, 8
    $region9: #{tpu_custom_call.1} parent=1 // pred_fallthru
      _
    // Predicated region
    $region10: #{tpu_custom_call.1} parent=1 // pred_check
      _
    $region11: #{tpu_custom_call.1} parent=1 // pred_check_branch
      %36 = sbr.rel (0) target = $region13
    $region12: #{tpu_custom_call.1} parent=1 // pred_region
      _
    $region13: #{tpu_custom_call.1} parent=1 // pred_fallthru
      _
    // Predicated region
    $region14: #{tpu_custom_call.1} parent=1 // pred_check
      _
    $region15: #{tpu_custom_call.1} parent=1 // pred_check_branch
      %38 = sbr.rel (0) target = $region17
    $region16: #{tpu_custom_call.1} parent=1 // pred_region
      %39 = dma.done [#allocation5], 256
    $region17: #{tpu_custom_call.1} parent=1 // pred_fallthru
      _
    // Predicated region
    $region18: #{tpu_custom_call.1} parent=1 // pred_check
      _
    $region19: #{tpu_custom_call.1} parent=1 // pred_check_branch
      %41 = sbr.rel (0) target = $region21
    $region20: #{tpu_custom_call.1} parent=1 // pred_region
      %42 = dma.done [#allocation8], 256
    $region21: #{tpu_custom_call.1} parent=1 // pred_fallthru
      _
    %p43 = scmp.eq.s32.totalorder 0, 0
    // Predicated region
    $region22: #{tpu_custom_call.1} parent=1 // pred_check
      %p44 = pneg %p43
    $region23: #{tpu_custom_call.1} parent=1 // pred_check_branch
      %46 = sbr.rel (%p44) target = $region25
    $region24: #{tpu_custom_call.1} parent=1 // pred_region
      %vm47 = vcmask 0
      %48 = vst.msk [vmem:[#allocation2] sm:$0x1] %vm47, 0.0
      %49 = vst.msk [vmem:[#allocation3] sm:$0x1] %vm47, 0.0
    $region25: #{tpu_custom_call.1} parent=1 // pred_fallthru
      _
    %v50 = vld [vmem:[#allocation4] sm:$0xff]
    %v51 = vld [vmem:[#allocation4 + $0x8] sm:$0xff]
    %v52 = vld [vmem:[#allocation7] sm:$0xff]
    %v53 = vld [vmem:[#allocation7 + $0x8] sm:$0xff]
    %v54 = vsub.f32 %v50, %v52
    %v55 = vsub.f32 %v51, %v53
    %v56 = vld [vmem:[#allocation2] sm:$0x1]
    %v57 = vmul.f32 %v54, %v54
    %v58 = vmul.f32 %v55, %v55
    %vm59 = vcmask 261120
    %v60 = vsel %vm59, %v57, 0.0
    %v61 = vsel %vm59, %v58, 0.0
    %v62 = vadd.f32 %v60, %v61
    %63 = vadd.xlane.f32.xlu0 %v62
    %v64 = vpop.xlane.xlu0 %63
    %v65 = vrot.slane %v64, 4
    %v66 = vadd.f32 %v64, %v65
    %v67 = vrot.slane %v66, 2
    %v68 = vadd.f32 %v66, %v67
    %v69 = vrot.slane %v68, 1
    %v70 = vadd.f32 %v68, %v69
    %s71 = vtos %v70
    %v72 = vstv %s71
    %v73 = vadd.f32 %v56, %v72
    %vm74 = vcmask 0
    %75 = vst.msk [vmem:[#allocation2] sm:$0x1] %vm74, %v73
    %v78 = vrot.slane %v54, 7
    %v79 = vrot.slane %v55, 7
    %v82 = vsub.f32 %v54, %v78
    %v83 = vsub.f32 %v55, %v79
    %v84 = vld [vmem:[#allocation3] sm:$0x1]
    %v85 = vmul.f32 %v82, %v82
    %v86 = vmul.f32 %v83, %v83
    %v89 = vrot.slane %v85, 1
    %v90 = vrot.slane %v86, 1
    %vm93 = vcmask 260096
    %v94 = vsel %vm93, %v89, 0.0
    %v95 = vsel %vm93, %v90, 0.0
    %v96 = vadd.f32 %v94, %v95
    %97 = vadd.xlane.f32.xlu0 %v96
    %v98 = vpop.xlane.xlu0 %97
    %v99 = vrot.slane %v98, 4
    %v100 = vadd.f32 %v98, %v99
    %v101 = vrot.slane %v100, 2
    %v102 = vadd.f32 %v100, %v101
    %v103 = vrot.slane %v102, 1
    %v104 = vadd.f32 %v102, %v103
    %s105 = vtos %v104
    %v106 = vstv %s105
    %v107 = vadd.f32 %v84, %v106
    %108 = vst.msk [vmem:[#allocation3] sm:$0x1] %vm74, %v107
    // Predicated region
    $region26: #{tpu_custom_call.1} parent=1 // pred_check
      %p109 = pneg %p43
    $region27: #{tpu_custom_call.1} parent=1 // pred_check_branch
      %111 = sbr.rel (%p109) target = $region29
    $region28: #{tpu_custom_call.1} parent=1 // pred_region
      %v112 = vld [vmem:[%s2] sm:$0x1]
      %v113 = vadd.f32 %v112, 1e-08
      %v114 = vlog2.pop %v113
      %v115 = vmul.f32 %v114, 0.6931472
      %v116 = vsub.f32 0.0, %v115
      %vm117 = vcmask 57344
      %v118 = vsel %vm117, %v116, 0.0
      %119 = vadd.xlane.f32.xlu0 %v118
      %v120 = vpop.xlane.xlu0 %119
      %v121 = vrot.slane %v120, 4
      %v122 = vadd.f32 %v120, %v121
      %v123 = vrot.slane %v122, 2
      %v124 = vadd.f32 %v122, %v123
      %v125 = vrot.slane %v124, 1
      %v126 = vadd.f32 %v124, %v125
      %s127 = vtos %v126
      %v128 = vld [vmem:[#allocation2] sm:$0x1]
      %v129 = vmul.f32 %v128, 0.001953125
      %s130 = smul.f32 %s127, 0.5
      %s131 = smul.f32 %s130, 0.125
      %v132 = vstv %s131
      %v133 = vadd.f32 %v129, %v132
      %v134 = vld [vmem:[#allocation3] sm:$0x1]
      %v135 = vmul.f32 %v134, 0.3
      %v136 = vmul.f32 %v135, 0.002232143
      %v137 = vadd.f32 %v133, %v136
      %138 = vst.msk [vmem:[#allocation9] sm:$0x1] %vm74, %v137
    $region29: #{tpu_custom_call.1} parent=1 // pred_fallthru
      _
    // Predicated region
    $region30: #{tpu_custom_call.1} parent=1 // pred_check
      _
    $region31: #{tpu_custom_call.1} parent=1 // pred_check_branch
      %140 = sbr.rel (0) target = $region33
    $region32: #{tpu_custom_call.1} parent=1 // pred_region
      %s142 = ssub.s32 16, 16
      %143 = vsyncadd [#allocation6], %s142
      %s145 = sshll.u32 [#allocation9], 4
      %s146 = int_to_ptr.vmem [resolvable:$true] %s145
      %148 = dma.vmem_to_hbm [thread:$0]  %s146, 16, %s3, [#allocation6]
    $region33: #{tpu_custom_call.1} parent=1 // pred_fallthru
      _
    // Predicated region
    $region34: #{tpu_custom_call.1} parent=1 // pred_check
      _
    $region35: #{tpu_custom_call.1} parent=1 // pred_check_branch
      %150 = sbr.rel (0) target = $region37
    $region36: #{tpu_custom_call.1} parent=1 // pred_region
      %151 = dma.done [#allocation6], 16
    $region37: #{tpu_custom_call.1} parent=1 // pred_fallthru
      _
    %152 = vsyncpa [#allocation5], 1
    %153 = vsyncpa [#allocation8], 1
    %154 = vsyncpa [#allocation6], 1

</llo_original>
